<compile_context>
chip_gen: v5e
topology: v5e:2x2
jax: 0.10.0
libtpu: 0.0.40
codegen_flags: <defaults>
</compile_context>

<pallas_src>
import functools

import jax
import jax.numpy as jnp
from jax.experimental import pallas as pl
from jax.experimental.pallas import tpu as pltpu


def _round_up(x, m):
  return ((x + m - 1) // m) * m


def _choose_batch_tile(batch, max_tile):
  """Pick a lane-aligned (multiple-of-128) batch tile and padded batch size."""
  bp = _round_up(batch, 128)
  max_tile = max(128, _round_up(max_tile, 128))
  steps = -(-bp // max_tile)
  if steps < 2 and bp >= 256:
    steps = 2  # keep >= 2 grid steps so both v7x TensorCores get work
  tb = _round_up(-(-bp // steps), 128)
  return tb, steps * tb


def _coupling_kernel(x_ref, lp_ref, w1_ref, b1_ref, w2_ref, b2_ref,
                     w3_ref, b3_ref, y_ref, lp_out_ref,
                     *, d1, d2, swap, reverse):
  """One batch tile, feature-major layout (batch on the lane axis).

  x_ref  : (D, TB)        input columns (original, unswapped order)
  lp_ref : (1, TB)        incoming logpx
  w1     : (H, d1)   b1 : (H, 1)
  w2     : (H, H)    b2 : (H, 1)
  w3     : (2*d2, H) b3 : (2*d2, 1)
  y_ref  : (D, TB)        output (already in the module's output column order)
  lp_out : (1, TB)        logpx + delta_logp
  """
  xt = x_ref[...]                                     # (D, TB)
  if swap:
    # Same column permutation the reference applies: [x[:, d1:], x[:, :d1]].
    xt = jnp.concatenate([xt[d1:, :], xt[:d1, :]], axis=0)
  x1 = xt[:d1, :]                                     # (d1, TB) conditioning
  x2 = xt[d1:, :]                                     # (d2, TB) transformed

  # --- net_s_t ---------------------------------------------------------
  # First Linear has K = d1 (tiny): do it on the VPU as broadcast-FMA
  # instead of wasting an MXU pass on a depth-2 contraction.
  w1 = w1_ref[...]                                    # (H, d1)
  h = b1_ref[...] + w1[:, 0:1] * x1[0:1, :]           # (H, TB)
  for k in range(1, d1):
    h = h + w1[:, k:k + 1] * x1[k:k + 1, :]
  h = jnp.maximum(h, 0.0)

  # Layers 2 & 3 on the MXU; batch (TB) is the wide N dimension.
  h = jnp.dot(w2_ref[...], h, preferred_element_type=jnp.float32) + b2_ref[...]
  h = jnp.maximum(h, 0.0)
  s_t = jnp.dot(w3_ref[...], h, preferred_element_type=jnp.float32) + b3_ref[...]

  # --- affine coupling -------------------------------------------------
  z = s_t[:d2, :] + 2.0
  # log(sigmoid(z)) computed without underflow: min(z, 0) - log(1 + exp(-|z|)).
  log_scale = jnp.minimum(z, 0.0) - jnp.log(1.0 + jnp.exp(-jnp.abs(z)))
  shift = s_t[d2:, :]
  logdetjac = jnp.sum(log_scale, axis=0, keepdims=True)   # (1, TB)

  if not reverse:
    y1 = x2 * jnp.exp(log_scale) + shift
    dlp = -logdetjac
  else:
    y1 = (x2 - shift) * jnp.exp(-log_scale)   # multiply by 1/scale, no divide
    dlp = logdetjac

  yt = (jnp.concatenate([y1, x1], axis=0) if swap
        else jnp.concatenate([x1, y1], axis=0))
  y_ref[...] = yt.astype(y_ref.dtype)
  lp_out_ref[...] = (lp_ref[...] + dlp).astype(lp_out_ref.dtype)


class CouplingLayerPallas:
  """JAX/Pallas port of the PyTorch CouplingLayer."""

  def __init__(self, d, intermediate_dim=64, swap=False, key=None):
    self.d_total = d
    self.d = d - d // 2          # d1: conditioning dims
    self.out_dim = d - self.d    # d2: transformed dims
    self.hidden = intermediate_dim
    self.swap = swap

    if key is None:
      key = jax.random.PRNGKey(42)
    k = jax.random.split(key, 6)

    def linear_init(kw, kb, fan_in, fan_out):
      # PyTorch default nn.Linear init: U(-1/sqrt(fan_in), 1/sqrt(fan_in)).
      bound = 1.0 / jnp.sqrt(fan_in)
      w = jax.random.uniform(kw, (fan_in, fan_out), jnp.float32, -bound, bound)
      b = jax.random.uniform(kb, (1, fan_out), jnp.float32, -bound, bound)
      return w, b

    self.w1, self.b1 = linear_init(k[0], k[1], self.d, self.hidden)
    self.w2, self.b2 = linear_init(k[2], k[3], self.hidden, self.hidden)
    self.w3, self.b3 = linear_init(k[4], k[5], self.hidden, 2 * self.out_dim)

    # Transposed copies for the kernel's feature-major layout.
    # NOTE: on v6e/v7x these (and the matmul inputs) could be cast to bf16 for
    # MXU throughput once the 1e-5 parity vs the f32 reference is relaxed.
    self.w1t, self.b1t = self.w1.T, self.b1.T          # (H, d1), (H, 1)
    self.w2t, self.b2t = self.w2.T, self.b2.T          # (H, H),  (H, 1)
    self.w3t, self.b3t = self.w3.T, self.b3.T          # (2*d2, H), (2*d2, 1)

  def __call__(self, x, logpx=None, reverse=False, batch_tile=1024):
    B, D = x.shape
    assert D == self.d_total
    d1, d2, H = self.d, self.out_dim, self.hidden

    TB, B_pad = _choose_batch_tile(B, batch_tile)

    # Feature-major [D, B]: batch on the 128-lane axis.
    x_t = x.T                                               # (D, B)
    lp_t = (jnp.zeros((1, B), jnp.float32) if logpx is None
            else logpx.astype(jnp.float32).T)               # (1, B)
    if B_pad != B:
      pad = B_pad - B
      x_t = jnp.pad(x_t, ((0, 0), (0, pad)))
      lp_t = jnp.pad(lp_t, ((0, 0), (0, pad)))

    kernel = functools.partial(_coupling_kernel, d1=d1, d2=d2,
                               swap=self.swap, reverse=reverse)
    grid = (B_pad // TB,)

    batch_spec = lambda rows: pl.BlockSpec((rows, TB), lambda i: (0, i))
    full_spec = lambda shape: pl.BlockSpec(shape, lambda i: (0, 0))

    y_t, lp_out = pl.pallas_call(
        kernel,
        out_shape=(
            jax.ShapeDtypeStruct((D, B_pad), x.dtype),
            jax.ShapeDtypeStruct((1, B_pad), jnp.float32),
        ),
        grid_spec=pltpu.PrefetchScalarGridSpec(
            num_scalar_prefetch=0,
            grid=grid,
            in_specs=[
                batch_spec(D),                # x        (D, TB)
                batch_spec(1),                # logpx    (1, TB)
                full_spec((H, d1)),           # w1t
                full_spec((H, 1)),            # b1t
                full_spec((H, H)),            # w2t
                full_spec((H, 1)),            # b2t
                full_spec((2 * d2, H)),       # w3t
                full_spec((2 * d2, 1)),       # b3t
            ],
            out_specs=[
                batch_spec(D),                # y        (D, TB)
                batch_spec(1),                # logpx + delta_logp
            ],
        ),
        compiler_params=pltpu.CompilerParams(
            dimension_semantics=("parallel",)),
    )(x_t, lp_t, self.w1t, self.b1t, self.w2t, self.b2t, self.w3t, self.b3t)

    y = y_t[:, :B].T
    if logpx is None:
      return y
    return y, lp_out[:, :B].T

  # Pure-JAX reference for verification.
  def reference(self, x, logpx=None, reverse=False):
    d1 = self.d
    if self.swap:
      x = jnp.concatenate([x[:, d1:], x[:, :d1]], axis=1)
    out_dim = x.shape[1] - d1
    h = jnp.maximum(x[:, :d1] @ self.w1 + self.b1, 0.0)
    h = jnp.maximum(h @ self.w2 + self.b2, 0.0)
    s_t = h @ self.w3 + self.b3
    scale = jax.nn.sigmoid(s_t[:, :out_dim] + 2.0)
    shift = s_t[:, out_dim:]
    logdetjac = jnp.sum(jnp.log(scale), axis=1, keepdims=True)
    if not reverse:
      y1 = x[:, d1:] * scale + shift
      dlp = -logdetjac
    else:
      y1 = (x[:, d1:] - shift) / scale
      dlp = logdetjac
    y = (jnp.concatenate([x[:, :d1], y1], axis=1) if not self.swap
         else jnp.concatenate([y1, x[:, :d1]], axis=1))
    if logpx is None:
      return y
    return y, logpx + dlp


if __name__ == "__main__":
  key = jax.random.PRNGKey(0)
  kx, kp, kw1, kw2, kx2, kp2 = jax.random.split(key, 6)

  # Small 2-D flow problem: batch 16, dimension 4.
  B, D = 16, 4
  x = jax.random.normal(kx, (B, D), jnp.float32)
  logpx = jax.random.normal(kp, (B, 1), jnp.float32)

  for swap, kw in ((False, kw1), (True, kw2)):
    layer = CouplingLayerPallas(d=D, intermediate_dim=64, swap=swap, key=kw)

    # forward
    y, new_logpx = layer(x, logpx=logpx, reverse=False)
    jax.block_until_ready((y, new_logpx))
    y_ref, logpx_ref = layer.reference(x, logpx=logpx, reverse=False)
    assert jnp.allclose(y, y_ref, atol=1e-5, rtol=1e-5)
    assert jnp.allclose(new_logpx, logpx_ref, atol=1e-5, rtol=1e-5)

    # reverse
    y_rev, logpx_rev = layer(x, logpx=logpx, reverse=True)
    jax.block_until_ready((y_rev, logpx_rev))
    y_rev_ref, logpx_rev_ref = layer.reference(x, logpx=logpx, reverse=True)
    assert jnp.allclose(y_rev, y_rev_ref, atol=1e-5, rtol=1e-5)
    assert jnp.allclose(logpx_rev, logpx_rev_ref, atol=1e-5, rtol=1e-5)

    # logpx=None path
    y_only = layer(x, reverse=False)
    jax.block_until_ready(y_only)
    assert jnp.allclose(y_only, y_ref, atol=1e-5, rtol=1e-5)

  # Exercise padding + multi-step grid (B not a multiple of the tile).
  B2 = 192
  x2 = jax.random.normal(kx2, (B2, D), jnp.float32)
  logpx2 = jax.random.normal(kp2, (B2, 1), jnp.float32)
  layer2 = CouplingLayerPallas(d=D, intermediate_dim=64, swap=True, key=kw2)
  y2, lp2 = layer2(x2, logpx=logpx2, reverse=False, batch_tile=128)
  jax.block_until_ready((y2, lp2))
  y2_ref, lp2_ref = layer2.reference(x2, logpx=logpx2, reverse=False)
  assert jnp.allclose(y2, y2_ref, atol=1e-5, rtol=1e-5)
  assert jnp.allclose(lp2, lp2_ref, atol=1e-5, rtol=1e-5)

  print("KERNEL_OK")
</pallas_src>

<mosaic_0001>
module attributes {stable_mosaic.version = 11 : i64} {
  func.func @_coupling_kernel(%arg0: i32, %arg1: memref<4x128xf32, #tpu.memory_space<vmem>>, %arg2: memref<1x128xf32, #tpu.memory_space<vmem>>, %arg3: memref<64x2xf32, #tpu.memory_space<vmem>>, %arg4: memref<64x1xf32, #tpu.memory_space<vmem>>, %arg5: memref<64x64xf32, #tpu.memory_space<vmem>>, %arg6: memref<64x1xf32, #tpu.memory_space<vmem>>, %arg7: memref<4x64xf32, #tpu.memory_space<vmem>>, %arg8: memref<4x1xf32, #tpu.memory_space<vmem>>, %arg9: memref<4x128xf32, #tpu.memory_space<vmem>>, %arg10: memref<1x128xf32, #tpu.memory_space<vmem>>) attributes {dimension_semantics = [#tpu.dimension_semantics<parallel>], iteration_bounds = array<i64: 1>, scalar_prefetch = 0 : i64, scratch_operands = 0 : i64, tpu.core_type = #tpu.core_type<tc>, window_params = [{transform_indices = @transform_0, window_bounds = array<i64: 4, 128>}, {transform_indices = @transform_1, window_bounds = array<i64: 1, 128>}, {pipeline_mode = #tpu.pipeline_mode<synchronous>, transform_indices = @transform_2, window_bounds = array<i64: 64, 2>}, {pipeline_mode = #tpu.pipeline_mode<synchronous>, transform_indices = @transform_3, window_bounds = array<i64: 64, 1>}, {pipeline_mode = #tpu.pipeline_mode<synchronous>, transform_indices = @transform_4, window_bounds = array<i64: 64, 64>}, {pipeline_mode = #tpu.pipeline_mode<synchronous>, transform_indices = @transform_5, window_bounds = array<i64: 64, 1>}, {pipeline_mode = #tpu.pipeline_mode<synchronous>, transform_indices = @transform_6, window_bounds = array<i64: 4, 64>}, {pipeline_mode = #tpu.pipeline_mode<synchronous>, transform_indices = @transform_7, window_bounds = array<i64: 4, 1>}, {transform_indices = @transform_8, window_bounds = array<i64: 4, 128>}, {transform_indices = @transform_9, window_bounds = array<i64: 1, 128>}]} {
    %c0 = arith.constant 0 : index
    %c0_0 = arith.constant 0 : index
    %0 = vector.load %arg1[%c0, %c0_0] : memref<4x128xf32, #tpu.memory_space<vmem>>, vector<4x128xf32>
    %1 = vector.extract_strided_slice %0 {offsets = [0, 0], sizes = [2, 128], strides = [1, 1]} : vector<4x128xf32> to vector<2x128xf32>
    %2 = vector.extract_strided_slice %0 {offsets = [2, 0], sizes = [2, 128], strides = [1, 1]} : vector<4x128xf32> to vector<2x128xf32>
    %c0_1 = arith.constant 0 : index
    %c0_2 = arith.constant 0 : index
    %3 = vector.load %arg3[%c0_1, %c0_2] : memref<64x2xf32, #tpu.memory_space<vmem>>, vector<64x2xf32>
    %c0_3 = arith.constant 0 : index
    %c0_4 = arith.constant 0 : index
    %4 = vector.load %arg4[%c0_3, %c0_4] : memref<64x1xf32, #tpu.memory_space<vmem>>, vector<64x1xf32>
    %5 = vector.extract_strided_slice %3 {offsets = [0, 0], sizes = [64, 1], strides = [1, 1]} : vector<64x2xf32> to vector<64x1xf32>
    %6 = vector.extract_strided_slice %1 {offsets = [0, 0], sizes = [1, 128], strides = [1, 1]} : vector<2x128xf32> to vector<1x128xf32>
    %7 = vector.broadcast %5 : vector<64x1xf32> to vector<64x128xf32>
    %8 = vector.broadcast %6 : vector<1x128xf32> to vector<64x128xf32>
    %9 = arith.mulf %7, %8 : vector<64x128xf32>
    %10 = vector.broadcast %4 : vector<64x1xf32> to vector<64x128xf32>
    %11 = arith.addf %10, %9 : vector<64x128xf32>
    %12 = vector.extract_strided_slice %3 {offsets = [0, 1], sizes = [64, 1], strides = [1, 1]} : vector<64x2xf32> to vector<64x1xf32>
    %13 = vector.extract_strided_slice %1 {offsets = [1, 0], sizes = [1, 128], strides = [1, 1]} : vector<2x128xf32> to vector<1x128xf32>
    %14 = vector.broadcast %12 : vector<64x1xf32> to vector<64x128xf32>
    %15 = vector.broadcast %13 : vector<1x128xf32> to vector<64x128xf32>
    %16 = arith.mulf %14, %15 : vector<64x128xf32>
    %17 = arith.addf %11, %16 : vector<64x128xf32>
    %cst = arith.constant 0.000000e+00 : f32
    %18 = vector.broadcast %cst : f32 to vector<64x128xf32>
    %19 = arith.maximumf %17, %18 : vector<64x128xf32>
    %c0_5 = arith.constant 0 : index
    %c0_6 = arith.constant 0 : index
    %20 = vector.load %arg5[%c0_5, %c0_6] : memref<64x64xf32, #tpu.memory_space<vmem>>, vector<64x64xf32>
    %cst_7 = arith.constant dense<0.000000e+00> : vector<64x128xf32>
    %21 = tpu.matmul %20, %19, %cst_7 {dimension_numbers = #tpu.dot_dimension_numbers<[1], [0], [0], [1], [0, 0, 1, 1], [], []>} : vector<64x64xf32>, vector<64x128xf32>, vector<64x128xf32> -> vector<64x128xf32>
    %c0_8 = arith.constant 0 : index
    %c0_9 = arith.constant 0 : index
    %22 = vector.load %arg6[%c0_8, %c0_9] : memref<64x1xf32, #tpu.memory_space<vmem>>, vector<64x1xf32>
    %23 = vector.broadcast %22 : vector<64x1xf32> to vector<64x128xf32>
    %24 = arith.addf %21, %23 : vector<64x128xf32>
    %cst_10 = arith.constant 0.000000e+00 : f32
    %25 = vector.broadcast %cst_10 : f32 to vector<64x128xf32>
    %26 = arith.maximumf %24, %25 : vector<64x128xf32>
    %c0_11 = arith.constant 0 : index
    %c0_12 = arith.constant 0 : index
    %27 = vector.load %arg7[%c0_11, %c0_12] : memref<4x64xf32, #tpu.memory_space<vmem>>, vector<4x64xf32>
    %cst_13 = arith.constant dense<0.000000e+00> : vector<4x128xf32>
    %28 = tpu.matmul %27, %26, %cst_13 {dimension_numbers = #tpu.dot_dimension_numbers<[1], [0], [0], [1], [0, 0, 1, 1], [], []>} : vector<4x64xf32>, vector<64x128xf32>, vector<4x128xf32> -> vector<4x128xf32>
    %c0_14 = arith.constant 0 : index
    %c0_15 = arith.constant 0 : index
    %29 = vector.load %arg8[%c0_14, %c0_15] : memref<4x1xf32, #tpu.memory_space<vmem>>, vector<4x1xf32>
    %30 = vector.broadcast %29 : vector<4x1xf32> to vector<4x128xf32>
    %31 = arith.addf %28, %30 : vector<4x128xf32>
    %32 = vector.extract_strided_slice %31 {offsets = [0, 0], sizes = [2, 128], strides = [1, 1]} : vector<4x128xf32> to vector<2x128xf32>
    %cst_16 = arith.constant 2.000000e+00 : f32
    %33 = vector.broadcast %cst_16 : f32 to vector<2x128xf32>
    %34 = arith.addf %32, %33 : vector<2x128xf32>
    %cst_17 = arith.constant 0.000000e+00 : f32
    %35 = vector.broadcast %cst_17 : f32 to vector<2x128xf32>
    %36 = arith.minimumf %34, %35 : vector<2x128xf32>
    %37 = math.absf %34 : vector<2x128xf32>
    %cst_18 = arith.constant 0.000000e+00 : f32
    %38 = vector.broadcast %cst_18 : f32 to vector<2x128xf32>
    %39 = arith.subf %38, %37 : vector<2x128xf32>
    %40 = math.exp %39 : vector<2x128xf32>
    %cst_19 = arith.constant 1.000000e+00 : f32
    %41 = vector.broadcast %cst_19 : f32 to vector<2x128xf32>
    %42 = arith.addf %41, %40 : vector<2x128xf32>
    %43 = math.log %42 : vector<2x128xf32>
    %44 = arith.subf %36, %43 : vector<2x128xf32>
    %45 = vector.extract_strided_slice %31 {offsets = [2, 0], sizes = [2, 128], strides = [1, 1]} : vector<4x128xf32> to vector<2x128xf32>
    %cst_20 = arith.constant dense<0.000000e+00> : vector<128xf32>
    %46 = vector.multi_reduction <add>, %44, %cst_20 [0] : vector<2x128xf32> to vector<128xf32>
    %47 = vector.shape_cast %46 : vector<128xf32> to vector<1x128xf32>
    %48 = math.exp %44 : vector<2x128xf32>
    %49 = arith.mulf %2, %48 : vector<2x128xf32>
    %50 = arith.addf %49, %45 : vector<2x128xf32>
    %cst_21 = arith.constant 0.000000e+00 : f32
    %51 = vector.broadcast %cst_21 : f32 to vector<1x128xf32>
    %52 = arith.subf %51, %47 : vector<1x128xf32>
    %53 = tpu.concatenate %1, %50 in 0 : vector<2x128xf32>, vector<2x128xf32> -> vector<4x128xf32>
    %c0_22 = arith.constant 0 : index
    %c0_23 = arith.constant 0 : index
    %54 = vector.load %arg9[%c0_22, %c0_23] : memref<4x128xf32, #tpu.memory_space<vmem>>, vector<4x128xf32>
    tpu.vector_store %arg9[%c0_22, %c0_23], %53 {strides = array<i32>} : memref<4x128xf32, #tpu.memory_space<vmem>>, vector<4x128xf32>,
    %c0_24 = arith.constant 0 : index
    %c0_25 = arith.constant 0 : index
    %55 = vector.load %arg2[%c0_24, %c0_25] : memref<1x128xf32, #tpu.memory_space<vmem>>, vector<1x128xf32>
    %56 = arith.addf %55, %52 : vector<1x128xf32>
    %c0_26 = arith.constant 0 : index
    %c0_27 = arith.constant 0 : index
    %57 = vector.load %arg10[%c0_26, %c0_27] : memref<1x128xf32, #tpu.memory_space<vmem>>, vector<1x128xf32>
    tpu.vector_store %arg10[%c0_26, %c0_27], %56 {strides = array<i32>} : memref<1x128xf32, #tpu.memory_space<vmem>>, vector<1x128xf32>,
    return
  }
  func.func @transform_0(%arg0: i32) -> (i32, i32) {
    %c0_i32 = arith.constant 0 : i32
    %c0_i32_0 = arith.constant 0 : i32
    return %c0_i32, %arg0 : i32, i32
  }
  func.func @transform_1(%arg0: i32) -> (i32, i32) {
    %c0_i32 = arith.constant 0 : i32
    %c0_i32_0 = arith.constant 0 : i32
    return %c0_i32, %arg0 : i32, i32
  }
  func.func @transform_2(%arg0: i32) -> (i32, i32) {
    %c0_i32 = arith.constant 0 : i32
    %c0_i32_0 = arith.constant 0 : i32
    %c0_i32_1 = arith.constant 0 : i32
    return %c0_i32, %c0_i32_0 : i32, i32
  }
  func.func @transform_3(%arg0: i32) -> (i32, i32) {
    %c0_i32 = arith.constant 0 : i32
    %c0_i32_0 = arith.constant 0 : i32
    %c0_i32_1 = arith.constant 0 : i32
    return %c0_i32, %c0_i32_0 : i32, i32
  }
  func.func @transform_4(%arg0: i32) -> (i32, i32) {
    %c0_i32 = arith.constant 0 : i32
    %c0_i32_0 = arith.constant 0 : i32
    %c0_i32_1 = arith.constant 0 : i32
    return %c0_i32, %c0_i32_0 : i32, i32
  }
  func.func @transform_5(%arg0: i32) -> (i32, i32) {
    %c0_i32 = arith.constant 0 : i32
    %c0_i32_0 = arith.constant 0 : i32
    %c0_i32_1 = arith.constant 0 : i32
    return %c0_i32, %c0_i32_0 : i32, i32
  }
  func.func @transform_6(%arg0: i32) -> (i32, i32) {
    %c0_i32 = arith.constant 0 : i32
    %c0_i32_0 = arith.constant 0 : i32
    %c0_i32_1 = arith.constant 0 : i32
    return %c0_i32, %c0_i32_0 : i32, i32
  }
  func.func @transform_7(%arg0: i32) -> (i32, i32) {
    %c0_i32 = arith.constant 0 : i32
    %c0_i32_0 = arith.constant 0 : i32
    %c0_i32_1 = arith.constant 0 : i32
    return %c0_i32, %c0_i32_0 : i32, i32
  }
  func.func @transform_8(%arg0: i32) -> (i32, i32) {
    %c0_i32 = arith.constant 0 : i32
    %c0_i32_0 = arith.constant 0 : i32
    return %c0_i32, %arg0 : i32, i32
  }
  func.func @transform_9(%arg0: i32) -> (i32, i32) {
    %c0_i32 = arith.constant 0 : i32
    %c0_i32_0 = arith.constant 0 : i32
    return %c0_i32, %arg0 : i32, i32
  }
}

</mosaic_0001>

<llo_original>
// kernel: tpu_custom_call.1
$region0: #{tpu_custom_call.1}
  #allocation0 [shape = 'u32[]', space=smem, size = 0x4, offset = 0x4, fixed_abs, tag = 'smem constant byte address 0x4 - core index']
  #allocation1 [shape = 'u32[72,128]{1,0:T(1,128)}', space=vmem, size = 0x9000, scoped, tag = 'internal scratch']
  %s0 = inlined_call_operand.vmem [shape: f32[4,128], index: 0, kind: input, shape index: {}]
  %s1 = inlined_call_operand.vmem [shape: f32[1,128], index: 1, kind: input, shape index: {}]
  %s2 = inlined_call_operand.vmem [shape: f32[64,2], index: 2, kind: input, shape index: {}]
  %s3 = inlined_call_operand.vmem [shape: f32[64,1], index: 3, kind: input, shape index: {}]
  %s4 = inlined_call_operand.vmem [shape: f32[64,64], index: 4, kind: input, shape index: {}]
  %s5 = inlined_call_operand.vmem [shape: f32[64,1], index: 5, kind: input, shape index: {}]
  %s6 = inlined_call_operand.vmem [shape: f32[4,64], index: 6, kind: input, shape index: {}]
  %s7 = inlined_call_operand.vmem [shape: f32[4,1], index: 7, kind: input, shape index: {}]
  %s8 = inlined_call_operand.hbm [shape: f32[4,128], index: 8, kind: output, shape index: {0}]
  %s9 = inlined_call_operand.hbm [shape: f32[1,128], index: 9, kind: output, shape index: {1}]
  %10 = xla_tuple %s8, %s9
  %s11 = sld [smem:[#allocation0]]
  $region50: #{tpu_custom_call.1} parent=0
    _
  %s13 = ssub.s32 1, %s11
  %s14 = scalar_select 0, %s13, %s11
  $region1: #{tpu_custom_call.1} parent=0
    #allocation2 [shape = 'u8[2048]{0}', space=vmem, size = 0x800, scoped, tag = 'output window, operand 0, single buffered']
    #allocation3 [shape = 's32[1]{0}', space=sflag, size = 0x4, scoped, tag = 'scoped memory for tpu_custom_call.1']
    #allocation4 [shape = 'u8[512]{0}', space=vmem, size = 0x400, scoped, tag = 'output window, operand 1, single buffered']
    #allocation5 [shape = 's32[1]{0}', space=sflag, size = 0x4, scoped, tag = 'scoped memory for tpu_custom_call.1']
    %15 = vsyncpa [#allocation3], 0
    %16 = vsyncpa [#allocation5], 0
    // Predicated region
    $region2: #{tpu_custom_call.1} parent=1 // pred_check
      _
    $region3: #{tpu_custom_call.1} parent=1 // pred_check_branch
      %18 = sbr.rel (0) target = $region5
    $region4: #{tpu_custom_call.1} parent=1 // pred_region
      _
    $region5: #{tpu_custom_call.1} parent=1 // pred_fallthru
      _
    // Predicated region
    $region6: #{tpu_custom_call.1} parent=1 // pred_check
      _
    $region7: #{tpu_custom_call.1} parent=1 // pred_check_branch
      %20 = sbr.rel (0) target = $region9
    $region8: #{tpu_custom_call.1} parent=1 // pred_region
      _
    $region9: #{tpu_custom_call.1} parent=1 // pred_fallthru
      _
    // Predicated region
    $region10: #{tpu_custom_call.1} parent=1 // pred_check
      _
    $region11: #{tpu_custom_call.1} parent=1 // pred_check_branch
      %22 = sbr.rel (0) target = $region13
    $region12: #{tpu_custom_call.1} parent=1 // pred_region
      _
    $region13: #{tpu_custom_call.1} parent=1 // pred_fallthru
      _
    // Predicated region
    $region14: #{tpu_custom_call.1} parent=1 // pred_check
      _
    $region15: #{tpu_custom_call.1} parent=1 // pred_check_branch
      %24 = sbr.rel (0) target = $region17
    $region16: #{tpu_custom_call.1} parent=1 // pred_region
      _
    $region17: #{tpu_custom_call.1} parent=1 // pred_fallthru
      _
    // Predicated region
    $region18: #{tpu_custom_call.1} parent=1 // pred_check
      _
    $region19: #{tpu_custom_call.1} parent=1 // pred_check_branch
      %26 = sbr.rel (0) target = $region21
    $region20: #{tpu_custom_call.1} parent=1 // pred_region
      _
    $region21: #{tpu_custom_call.1} parent=1 // pred_fallthru
      _
    // Predicated region
    $region22: #{tpu_custom_call.1} parent=1 // pred_check
      _
    $region23: #{tpu_custom_call.1} parent=1 // pred_check_branch
      %28 = sbr.rel (0) target = $region25
    $region24: #{tpu_custom_call.1} parent=1 // pred_region
      _
    $region25: #{tpu_custom_call.1} parent=1 // pred_fallthru
      _
    // Predicated region
    $region26: #{tpu_custom_call.1} parent=1 // pred_check
      _
    $region27: #{tpu_custom_call.1} parent=1 // pred_check_branch
      %30 = sbr.rel (0) target = $region29
    $region28: #{tpu_custom_call.1} parent=1 // pred_region
      _
    $region29: #{tpu_custom_call.1} parent=1 // pred_fallthru
      _
    // Predicated region
    $region30: #{tpu_custom_call.1} parent=1 // pred_check
      _
    $region31: #{tpu_custom_call.1} parent=1 // pred_check_branch
      %32 = sbr.rel (0) target = $region33
    $region32: #{tpu_custom_call.1} parent=1 // pred_region
      _
    $region33: #{tpu_custom_call.1} parent=1 // pred_fallthru
      _
    %v33 = vld [vmem:[%s0] sm:$0xf]
    %v34 = vld [vmem:[%s2] sm:$0xff]
    %v35 = vld [vmem:[%s2 + $0x8] sm:$0xff]
    %v36 = vld [vmem:[%s2 + $0x10] sm:$0xff]
    %v37 = vld [vmem:[%s2 + $0x18] sm:$0xff]
    %v38 = vld [vmem:[%s2 + $0x20] sm:$0xff]
    %v39 = vld [vmem:[%s2 + $0x28] sm:$0xff]
    %v40 = vld [vmem:[%s2 + $0x30] sm:$0xff]
    %v41 = vld [vmem:[%s2 + $0x38] sm:$0xff]
    %v42 = vld [vmem:[%s3] sm:$0xff]
    %v43 = vld [vmem:[%s3 + $0x8] sm:$0xff]
    %v44 = vld [vmem:[%s3 + $0x10] sm:$0xff]
    %v45 = vld [vmem:[%s3 + $0x18] sm:$0xff]
    %v46 = vld [vmem:[%s3 + $0x20] sm:$0xff]
    %v47 = vld [vmem:[%s3 + $0x28] sm:$0xff]
    %v48 = vld [vmem:[%s3 + $0x30] sm:$0xff]
    %v49 = vld [vmem:[%s3 + $0x38] sm:$0xff]
    %51 = vset.pattern.permute.xlu0 0
    %52 = vperm.xlu0 %51, %v34
    %v53 = vpop.permute.xlu0 %52
    %56 = vset.pattern.permute.xlu0 0
    %57 = vperm.xlu0 %56, %v35
    %v58 = vpop.permute.xlu0 %57
    %61 = vset.pattern.permute.xlu0 0
    %62 = vperm.xlu0 %61, %v36
    %v63 = vpop.permute.xlu0 %62
    %66 = vset.pattern.permute.xlu0 0
    %67 = vperm.xlu0 %66, %v37
    %v68 = vpop.permute.xlu0 %67
    %71 = vset.pattern.permute.xlu0 0
    %72 = vperm.xlu0 %71, %v38
    %v73 = vpop.permute.xlu0 %72
    %76 = vset.pattern.permute.xlu0 0
    %77 = vperm.xlu0 %76, %v39
    %v78 = vpop.permute.xlu0 %77
    %81 = vset.pattern.permute.xlu0 0
    %82 = vperm.xlu0 %81, %v40
    %v83 = vpop.permute.xlu0 %82
    %86 = vset.pattern.permute.xlu0 0
    %87 = vperm.xlu0 %86, %v41
    %v88 = vpop.permute.xlu0 %87
    %v90 = vperm.slane %v33, 0
    %v91 = vmul.f32 %v53, %v90
    %v92 = vmul.f32 %v58, %v90
    %v93 = vmul.f32 %v63, %v90
    %v94 = vmul.f32 %v68, %v90
    %v95 = vmul.f32 %v73, %v90
    %v96 = vmul.f32 %v78, %v90
    %v97 = vmul.f32 %v83, %v90
    %v98 = vmul.f32 %v88, %v90
    %100 = vset.pattern.permute.xlu0 0
    %101 = vperm.xlu0 %100, %v42
    %v102 = vpop.permute.xlu0 %101
    %105 = vset.pattern.permute.xlu0 0
    %106 = vperm.xlu0 %105, %v43
    %v107 = vpop.permute.xlu0 %106
    %110 = vset.pattern.permute.xlu0 0
    %111 = vperm.xlu0 %110, %v44
    %v112 = vpop.permute.xlu0 %111
    %115 = vset.pattern.permute.xlu0 0
    %116 = vperm.xlu0 %115, %v45
    %v117 = vpop.permute.xlu0 %116
    %120 = vset.pattern.permute.xlu0 0
    %121 = vperm.xlu0 %120, %v46
    %v122 = vpop.permute.xlu0 %121
    %125 = vset.pattern.permute.xlu0 0
    %126 = vperm.xlu0 %125, %v47
    %v127 = vpop.permute.xlu0 %126
    %130 = vset.pattern.permute.xlu0 0
    %131 = vperm.xlu0 %130, %v48
    %v132 = vpop.permute.xlu0 %131
    %135 = vset.pattern.permute.xlu0 0
    %136 = vperm.xlu0 %135, %v49
    %v137 = vpop.permute.xlu0 %136
    %v139 = vadd.f32 %v102, %v91
    %v140 = vadd.f32 %v107, %v92
    %v141 = vadd.f32 %v112, %v93
    %v142 = vadd.f32 %v117, %v94
    %v143 = vadd.f32 %v122, %v95
    %v144 = vadd.f32 %v127, %v96
    %v145 = vadd.f32 %v132, %v97
    %v146 = vadd.f32 %v137, %v98
    %147 = vset.pattern.permute.xlu0 1
    %148 = vperm.xlu0 %147, %v34
    %v149 = vpop.permute.xlu0 %148
    %151 = vset.pattern.permute.xlu0 1
    %152 = vperm.xlu0 %151, %v35
    %v153 = vpop.permute.xlu0 %152
    %155 = vset.pattern.permute.xlu0 1
    %156 = vperm.xlu0 %155, %v36
    %v157 = vpop.permute.xlu0 %156
    %159 = vset.pattern.permute.xlu0 1
    %160 = vperm.xlu0 %159, %v37
    %v161 = vpop.permute.xlu0 %160
    %163 = vset.pattern.permute.xlu0 1
    %164 = vperm.xlu0 %163, %v38
    %v165 = vpop.permute.xlu0 %164
    %167 = vset.pattern.permute.xlu0 1
    %168 = vperm.xlu0 %167, %v39
    %v169 = vpop.permute.xlu0 %168
    %171 = vset.pattern.permute.xlu0 1
    %172 = vperm.xlu0 %171, %v40
    %v173 = vpop.permute.xlu0 %172
    %175 = vset.pattern.permute.xlu0 1
    %176 = vperm.xlu0 %175, %v41
    %v177 = vpop.permute.xlu0 %176
    %v179 = vperm.slane %v33, 1
    %v180 = vmul.f32 %v149, %v179
    %v181 = vmul.f32 %v153, %v179
    %v182 = vmul.f32 %v157, %v179
    %v183 = vmul.f32 %v161, %v179
    %v184 = vmul.f32 %v165, %v179
    %v185 = vmul.f32 %v169, %v179
    %v186 = vmul.f32 %v173, %v179
    %v187 = vmul.f32 %v177, %v179
    %v188 = vadd.f32 %v139, %v180
    %v189 = vadd.f32 %v140, %v181
    %v190 = vadd.f32 %v141, %v182
    %v191 = vadd.f32 %v142, %v183
    %v192 = vadd.f32 %v143, %v184
    %v193 = vadd.f32 %v144, %v185
    %v194 = vadd.f32 %v145, %v186
    %v195 = vadd.f32 %v146, %v187
    %v196 = vmax.f32 %v188, 0.0
    %v197 = vmax.f32 %v189, 0.0
    %v198 = vmax.f32 %v190, 0.0
    %v199 = vmax.f32 %v191, 0.0
    %v200 = vmax.f32 %v192, 0.0
    %v201 = vmax.f32 %v193, 0.0
    %v202 = vmax.f32 %v194, 0.0
    %v203 = vmax.f32 %v195, 0.0
    %v204 = vld [vmem:[%s4] sm:$0xff]
    %v205 = vld [vmem:[%s4 + $0x8] sm:$0xff]
    %v206 = vld [vmem:[%s4 + $0x10] sm:$0xff]
    %v207 = vld [vmem:[%s4 + $0x18] sm:$0xff]
    %v208 = vld [vmem:[%s4 + $0x20] sm:$0xff]
    %v209 = vld [vmem:[%s4 + $0x28] sm:$0xff]
    %v210 = vld [vmem:[%s4 + $0x30] sm:$0xff]
    %v211 = vld [vmem:[%s4 + $0x38] sm:$0xff]
    %v212 = vld [vmem:[%s5] sm:$0xff]
    %v213 = vld [vmem:[%s5 + $0x8] sm:$0xff]
    %v214 = vld [vmem:[%s5 + $0x10] sm:$0xff]
    %v215 = vld [vmem:[%s5 + $0x18] sm:$0xff]
    %v216 = vld [vmem:[%s5 + $0x20] sm:$0xff]
    %v217 = vld [vmem:[%s5 + $0x28] sm:$0xff]
    %v218 = vld [vmem:[%s5 + $0x30] sm:$0xff]
    %v219 = vld [vmem:[%s5 + $0x38] sm:$0xff]
    %221 = vset.pattern.permute.xlu0 0
    %222 = vperm.xlu0 %221, %v212
    %v223 = vpop.permute.xlu0 %222
    %226 = vset.pattern.permute.xlu0 0
    %227 = vperm.xlu0 %226, %v213
    %v228 = vpop.permute.xlu0 %227
    %231 = vset.pattern.permute.xlu0 0
    %232 = vperm.xlu0 %231, %v214
    %v233 = vpop.permute.xlu0 %232
    %236 = vset.pattern.permute.xlu0 0
    %237 = vperm.xlu0 %236, %v215
    %v238 = vpop.permute.xlu0 %237
    %241 = vset.pattern.permute.xlu0 0
    %242 = vperm.xlu0 %241, %v216
    %v243 = vpop.permute.xlu0 %242
    %246 = vset.pattern.permute.xlu0 0
    %247 = vperm.xlu0 %246, %v217
    %v248 = vpop.permute.xlu0 %247
    %251 = vset.pattern.permute.xlu0 0
    %252 = vperm.xlu0 %251, %v218
    %v253 = vpop.permute.xlu0 %252
    %256 = vset.pattern.permute.xlu0 0
    %257 = vperm.xlu0 %256, %v219
    %v258 = vpop.permute.xlu0 %257
    %vm260 = vcmask 523264
    %v262 = vsel %vm260, %v204, 0
    %v265 = vsel %vm260, %v205, 0
    %v268 = vsel %vm260, %v206, 0
    %v271 = vsel %vm260, %v207, 0
    %v274 = vsel %vm260, %v208, 0
    %v277 = vsel %vm260, %v209, 0
    %v280 = vsel %vm260, %v210, 0
    %v283 = vsel %vm260, %v211, 0
    %285 = vmatpush.msra.mxu0 0.0
    %286 = vmatpush.msra.mxu0 0.0
    %287 = vmatpush.msra.mxu0 0.0
    %288 = vmatpush.msra.mxu0 0.0
    %289 = vmatpush.msra.mxu0 0.0
    %290 = vmatpush.msra.mxu0 0.0
    %291 = vmatpush.msra.mxu0 0.0
    %292 = vmatpush.msra.mxu0 0.0
    %293 = vmatpush.msra.mxu0 %v203
    %294 = vmatpush.msra.mxu0 %v202
    %295 = vmatpush.msra.mxu0 %v201
    %296 = vmatpush.msra.mxu0 %v200
    %297 = vmatpush.msra.mxu0 %v199
    %298 = vmatpush.msra.mxu0 %v198
    %299 = vmatpush.msra.mxu0 %v197
    %300 = vmatpush.msra.mxu0 %v196
    %301 = vmatmul.f32.gmra.mxu0 %v262
    %v302 = vpop.f32.mrf.mxu0
    %v303 = vadd.f32 %v223, %v302
    %304 = vmatmul.f32.gmra.mxu0 %v265
    %v305 = vpop.f32.mrf.mxu0
    %v306 = vadd.f32 %v228, %v305
    %307 = vmatmul.f32.gmra.mxu0 %v268
    %v308 = vpop.f32.mrf.mxu0
    %v309 = vadd.f32 %v233, %v308
    %310 = vmatmul.f32.gmra.mxu0 %v271
    %v311 = vpop.f32.mrf.mxu0
    %v312 = vadd.f32 %v238, %v311
    %313 = vmatmul.f32.gmra.mxu0 %v274
    %v314 = vpop.f32.mrf.mxu0
    %v315 = vadd.f32 %v243, %v314
    %316 = vmatmul.f32.gmra.mxu0 %v277
    %v317 = vpop.f32.mrf.mxu0
    %v318 = vadd.f32 %v248, %v317
    %319 = vmatmul.f32.gmra.mxu0 %v280
    %v320 = vpop.f32.mrf.mxu0
    %v321 = vadd.f32 %v253, %v320
    %322 = vmatmul.f32.gmra.mxu0 %v283
    %v323 = vpop.f32.mrf.mxu0
    %v324 = vadd.f32 %v258, %v323
    %325 = vdwg.mxu0
    %v326 = vmax.f32 %v303, 0.0
    %v327 = vmax.f32 %v306, 0.0
    %v328 = vmax.f32 %v309, 0.0
    %v329 = vmax.f32 %v312, 0.0
    %v330 = vmax.f32 %v315, 0.0
    %v331 = vmax.f32 %v318, 0.0
    %v332 = vmax.f32 %v321, 0.0
    %v333 = vmax.f32 %v324, 0.0
    %v334 = vld [vmem:[%s6] sm:$0xf]
    %v335 = vld [vmem:[%s7] sm:$0xf]
    %337 = vset.pattern.permute.xlu0 0
    %338 = vperm.xlu0 %337, %v335
    %v339 = vpop.permute.xlu0 %338
    %v342 = vsel %vm260, %v334, 0
    %344 = vmatpush.msra.mxu0 0.0
    %345 = vmatpush.msra.mxu0 0.0
    %346 = vmatpush.msra.mxu0 0.0
    %347 = vmatpush.msra.mxu0 0.0
    %348 = vmatpush.msra.mxu0 0.0
    %349 = vmatpush.msra.mxu0 0.0
    %350 = vmatpush.msra.mxu0 0.0
    %351 = vmatpush.msra.mxu0 0.0
    %352 = vmatpush.msra.mxu0 %v333
    %353 = vmatpush.msra.mxu0 %v332
    %354 = vmatpush.msra.mxu0 %v331
    %355 = vmatpush.msra.mxu0 %v330
    %356 = vmatpush.msra.mxu0 %v329
    %357 = vmatpush.msra.mxu0 %v328
    %358 = vmatpush.msra.mxu0 %v327
    %359 = vmatpush.msra.mxu0 %v326
    %360 = vmatmul.f32.gmra.mxu0 %v342
    %v361 = vpop.f32.mrf.mxu0
    %v362 = vadd.f32 %v339, %v361
    %363 = vdwg.mxu0
    %v364 = vadd.f32 %v362, 2.0
    %v365 = vmin.f32 %v364, 0.0
    %v366 = vand.u32 2147483647, %v364
    %v367 = vsub.f32 0.0, %v366
    %v368 = vmul.f32 %v367, 1.442695
    %v369 = vpow.pop %v368
    %v370 = vadd.f32 %v369, 1.0
    %v371 = vlog2.pop %v370
    %v372 = vmul.f32 %v371, 0.6931472
    %v373 = vsub.f32 %v365, %v372
    %vm374 = vcmask 1041408
    %v375 = vsel %vm374, %v373, 0.0
    %v376 = vrot.slane %v375, 4
    %v377 = vadd.f32 %v375, %v376
    %v378 = vrot.slane %v377, 2
    %v379 = vadd.f32 %v377, %v378
    %v380 = vrot.slane %v379, 1
    %v381 = vadd.f32 %v379, %v380
    %v382 = vmul.f32 %v373, 1.442695
    %v383 = vpow.pop %v382
    %v385 = vrot.slane %v383, 6
    %v387 = vmul.f32 %v33, %v385
    %v388 = vadd.f32 %v387, %v362
    %v389 = vsub.f32 0.0, %v381
    %v390 = vsel %vm374, %v33, %v388
    %391 = vst [vmem:[#allocation2] sm:$0xf] %v390
    %v392 = vld [vmem:[%s1] sm:$0x1]
    %v393 = vadd.f32 %v392, %v389
    %394 = vst [vmem:[#allocation4] sm:$0x1] %v393
    // Predicated region
    $region34: #{tpu_custom_call.1} parent=1 // pred_check
      _
    $region35: #{tpu_custom_call.1} parent=1 // pred_check_branch
      %396 = sbr.rel (0) target = $region37
    $region36: #{tpu_custom_call.1} parent=1 // pred_region
      %398 = vsyncadd [#allocation3], 0
      %s400 = sshll.u32 [#allocation2], 4
      %s401 = int_to_ptr.vmem [resolvable:$true] %s400
      %s402 = sshll.u32 %s8, 4
      %s403 = int_to_ptr.hbm [resolvable:$true] %s402
      %405 = dma.vmem_to_hbm [thread:$0]  %s401, 64, %s403, [#allocation3]
    $region37: #{tpu_custom_call.1} parent=1 // pred_fallthru
      _
    // Predicated region
    $region38: #{tpu_custom_call.1} parent=1 // pred_check
      _
    $region39: #{tpu_custom_call.1} parent=1 // pred_check_branch
      %407 = sbr.rel (0) target = $region41
    $region40: #{tpu_custom_call.1} parent=1 // pred_region
      %409 = vsyncadd [#allocation5], 0
      %s411 = sshll.u32 [#allocation4], 4
      %s412 = int_to_ptr.vmem [resolvable:$true] %s411
      %s413 = sshll.u32 %s9, 4
      %s414 = int_to_ptr.hbm [resolvable:$true] %s413
      %416 = dma.vmem_to_hbm [thread:$0]  %s412, 16, %s414, [#allocation5]
    $region41: #{tpu_custom_call.1} parent=1 // pred_fallthru
      _
    // Predicated region
    $region42: #{tpu_custom_call.1} parent=1 // pred_check
      _
    $region43: #{tpu_custom_call.1} parent=1 // pred_check_branch
      %418 = sbr.rel (0) target = $region45
    $region44: #{tpu_custom_call.1} parent=1 // pred_region
      %420 = dma.done [#allocation3], 64
    $region45: #{tpu_custom_call.1} parent=1 // pred_fallthru
      _
    // Predicated region
    $region46: #{tpu_custom_call.1} parent=1 // pred_check
      _
    $region47: #{tpu_custom_call.1} parent=1 // pred_check_branch
      %422 = sbr.rel (0) target = $region49
    $region48: #{tpu_custom_call.1} parent=1 // pred_region
      %424 = dma.done [#allocation5], 16
    $region49: #{tpu_custom_call.1} parent=1 // pred_fallthru
      _
    %425 = vsyncpa [#allocation3], 1
    %426 = vsyncpa [#allocation5], 1

</llo_original>
